<compile_context>
chip_gen: v7x
topology: tpu7x:2x2x1
jax: 0.10.0
libtpu: 0.0.40
codegen_flags: <defaults>
</compile_context>

<pallas_src>
import functools

import jax
import jax.numpy as jnp
from jax.experimental import pallas as pl
from jax.experimental.pallas import tpu as pltpu

BN_EPS = 1e-5  # nn.BatchNorm1d default eps


def _row_softmax(h):
    """Numerically-stable row softmax; denominator on the EUP (approx vrcp)."""
    m = jnp.max(h, axis=-1, keepdims=True)
    e = jnp.exp(h - m)
    return e * pl.reciprocal(jnp.sum(e, axis=-1, keepdims=True), approx=True)


def _dgcn_fused_kernel(d_ref, x_ref, *rest, num_layers, n, f_final,
                       compute_dtype):
    """Whole DGCN forward (both towers, all layers) in one kernel.

    d_ref : (2N, N) stacked diffusion operand.  Rows [0, N) are the adjacency
            diffusion; rows [N, 2N) are the PPMI diffusion pre-scaled by the
            eval-mode BatchNorm factor 1/sqrt(1+eps).
    x_ref : (N, F0) node features.
    rest  : w_0..w_{L-1} weight refs (last one column-padded to a multiple of
            128 lanes), then (out_a_ref, out_p_ref) with 128-lane-padded cols.
    """
    w_refs = rest[:num_layers]
    oa_ref, op_ref = rest[num_layers:]

    inv_bn_scale = (1.0 + BN_EPS) ** 0.5  # undoes the folded BN scale (no BN
                                          # on the final layer)

    def mm(a, b):
        return jnp.dot(a, b, preferred_element_type=jnp.float32)

    def finish(h_a, h_p):
        # Final layer: PPMI tower has no BatchNorm, so undo the scale folded
        # into its diffusion rows.
        h_p = h_p * inv_bn_scale
        # Mask the lane-padding columns so they vanish under softmax, keeping
        # the output store lane-dense (full 128-lane vst).
        col = jax.lax.broadcasted_iota(jnp.int32, h_a.shape, 1)
        neg = jnp.float32(-1e30)
        h_a = jnp.where(col < f_final, h_a, neg)
        h_p = jnp.where(col < f_final, h_p, neg)
        oa_ref[...] = _row_softmax(h_a)
        op_ref[...] = _row_softmax(h_p)

    # ----- layer 0: both towers see the same X and share W0, so X @ W0 is
    # computed once and the stacked diffusion applies both towers in a single
    # MXU issue.  Association picked per layer from static shapes.
    w0 = w_refs[0][...]
    f_in, f_out = w_refs[0].shape
    x = x_ref[...]
    if f_out <= f_in:
        xw0 = mm(x, w0).astype(compute_dtype)
        h_all = mm(d_ref[...], xw0)                      # (2N, f_out)
    else:  # fewer MXU flops doing (D @ X) @ W when the layer widens
        h_all = mm(mm(d_ref[...], x).astype(compute_dtype), w0)
    h_a = h_all[:n]          # row-aligned value slices (N multiple of 8/16)
    h_p = h_all[n:]

    if num_layers == 1:
        finish(h_a, h_p)
        return

    a_a = jnp.maximum(h_a, 0.0).astype(compute_dtype)
    a_p = jnp.maximum(h_p, 0.0).astype(compute_dtype)

    # Static ref-view slices of the stacked diffusion operand (free).
    d_a = d_ref[:n, :]
    d_p = d_ref[n:, :]       # bn_scale folded in by the wrapper

    # ----- remaining layers: per-tower activations differ; W is shared.  Run
    # each tower on its own slice (same MXU flops, no 2N x F concat copies).
    for l in range(1, num_layers):
        w = w_refs[l][...]
        f_in, f_out = w_refs[l].shape
        is_last = (l == num_layers - 1)
        if f_out <= f_in:
            h_a = mm(d_a, mm(a_a, w).astype(compute_dtype))
            h_p = mm(d_p, mm(a_p, w).astype(compute_dtype))
        else:
            h_a = mm(mm(d_a, a_a).astype(compute_dtype), w)
            h_p = mm(mm(d_p, a_p).astype(compute_dtype), w)
        if is_last:
            finish(h_a, h_p)
        else:
            a_a = jnp.maximum(h_a, 0.0).astype(compute_dtype)
            a_p = jnp.maximum(h_p, 0.0).astype(compute_dtype)


def dgcn_forward(x, adjacency, ppmi, weights, *, use_bf16_matmul=False):
    """Fused DGCN forward on TPU. Returns (output_a, output_ppmi).

    weights: list of (F_l, F_{l+1}) matrices shared by both towers.
    Dropout is identity (eval mode); BatchNorm1d uses eval-mode running stats
    (mean=0, var=1), folded into the PPMI half of the stacked diffusion
    operand here (exact: the scale is applied where BN would be).
    # TODO(synk): training-mode dropout and BN batch statistics.
    """
    n, _ = x.shape
    # Row-aligned splits of the stacked (2N, .) operand need N to be a
    # sublane multiple (8 for f32, 16 for bf16).
    # TODO(synk): pad N up to the sublane multiple for arbitrary graphs.
    assert n % (16 if use_bf16_matmul else 8) == 0

    num_layers = len(weights)
    f_final = weights[-1].shape[1]
    f_pad = ((f_final + 127) // 128) * 128      # lane-dense output width

    compute_dtype = jnp.bfloat16 if use_bf16_matmul else jnp.float32

    # Fold eval-mode BatchNorm scale into the PPMI rows of the single stacked
    # diffusion operand (one (2N, N) array, cast once).
    bn_scale = 1.0 / (1.0 + BN_EPS) ** 0.5
    d_stack = jnp.concatenate(
        [adjacency.astype(jnp.float32),
         ppmi.astype(jnp.float32) * bn_scale], axis=0).astype(compute_dtype)

    # Cast operands once in the wrapper (no per-layer in-kernel re-casts);
    # pad the classifier weight's columns to the lane-dense width with zeros
    # (padded logits are masked to -inf before softmax inside the kernel).
    w_list = [w.astype(compute_dtype) for w in weights[:-1]]
    w_last = jnp.pad(weights[-1].astype(jnp.float32),
                     ((0, 0), (0, f_pad - f_final))).astype(compute_dtype)
    w_list.append(w_last)
    x_in = x.astype(compute_dtype)

    kernel = functools.partial(
        _dgcn_fused_kernel, num_layers=num_layers, n=n, f_final=f_final,
        compute_dtype=compute_dtype)

    def full(shape):
        return pl.BlockSpec(shape, lambda: (0,) * len(shape))

    in_specs = [full(d_stack.shape), full(x_in.shape)]
    in_specs += [full(w.shape) for w in w_list]
    out_specs = (full((n, f_pad)), full((n, f_pad)))
    out_shape = (jax.ShapeDtypeStruct((n, f_pad), jnp.float32),
                 jax.ShapeDtypeStruct((n, f_pad), jnp.float32))

    # Explicit VMEM budget: resident operands + f32 outputs, doubled for the
    # pipeline's buffering, plus slack for temporaries; capped at the v7x
    # physical 64 MiB.
    itemsize = jnp.dtype(compute_dtype).itemsize
    operand_bytes = (d_stack.size + x_in.size) * itemsize
    operand_bytes += sum(w.size for w in w_list) * itemsize
    operand_bytes += 2 * n * f_pad * 4
    vmem_limit = int(min(max(2 * operand_bytes + (8 << 20), 16 << 20), 64 << 20))

    # Single full-array block per operand: at these sizes the whole problem
    # fits in VMEM; a grid would only add per-step loop overhead.
    # TODO(synk): for large N, row-tile the stacked diffusion operand with a
    # ("parallel",) grid axis (megacore on v7x), keep weights / XW slab
    # resident in VMEM scratch, and sweep pipeline_mode=pl.Buffered(2..3).
    out_a, out_p = pl.pallas_call(
        kernel,
        out_shape=out_shape,
        in_specs=in_specs,
        out_specs=out_specs,
        compiler_params=pltpu.CompilerParams(vmem_limit_bytes=vmem_limit),
    )(d_stack, x_in, *w_list)

    return out_a[:, :f_final], out_p[:, :f_final]


def _reference_forward(x, adjacency, ppmi, weights):
    """Pure-JAX reference with identical eval-mode semantics, for validation."""
    bn_scale = 1.0 / (1.0 + BN_EPS) ** 0.5
    out_a, out_p = x, x
    num_layers = len(weights)
    for l, w in enumerate(weights):
        is_last = (l + 1 == num_layers)
        h_a = adjacency @ (out_a @ w)
        h_p = ppmi @ (out_p @ w)
        if is_last:
            out_a = jax.nn.softmax(h_a, axis=-1)
            out_p = jax.nn.softmax(h_p, axis=-1)
        else:
            out_a = jax.nn.relu(h_a)
            out_p = jax.nn.relu(h_p * bn_scale)
    return out_a, out_p


def _make_params(key, layer_sizes):
    """Deterministic glorot-uniform-ish weights (shared by both towers)."""
    weights = []
    for l in range(len(layer_sizes) - 1):
        key, sub = jax.random.split(key)
        fan_in, fan_out = layer_sizes[l], layer_sizes[l + 1]
        limit = (6.0 / (fan_in + fan_out)) ** 0.5
        weights.append(
            jax.random.uniform(sub, (fan_in, fan_out), jnp.float32,
                               minval=-limit, maxval=limit)
        )
    return weights


def _make_graph(key, n):
    """Deterministic normalized adjacency and PPMI-like matrices, both (N, N)."""
    key_a, key_p = jax.random.split(key)
    # random symmetric adjacency with self-loops, row-normalized (D^-1 (A+I))
    a = (jax.random.uniform(key_a, (n, n)) > 0.7).astype(jnp.float32)
    a = jnp.maximum(a, a.T) + jnp.eye(n, dtype=jnp.float32)
    a = a / jnp.sum(a, axis=1, keepdims=True)
    # PPMI-like: non-negative symmetric, row-normalized
    p = jax.nn.relu(jax.random.normal(key_p, (n, n)))
    p = (p + p.T) * 0.5 + jnp.eye(n, dtype=jnp.float32)
    p = p / jnp.sum(p, axis=1, keepdims=True)
    return a, p


if __name__ == "__main__":
    key = jax.random.PRNGKey(0)
    k_x, k_g, k_w = jax.random.split(key, 3)

    N = 16                      # number of graph nodes
    layer_sizes = [32, 16, 4]   # input features -> hidden -> classes

    x = jax.random.normal(k_x, (N, layer_sizes[0]), jnp.float32)
    adjacency, ppmi = _make_graph(k_g, N)
    weights = _make_params(k_w, layer_sizes)

    out_a, out_ppmi = dgcn_forward(x, adjacency, ppmi, weights)
    jax.block_until_ready((out_a, out_ppmi))

    ref_a, ref_p = _reference_forward(x, adjacency, ppmi, weights)

    assert out_a.shape == (N, layer_sizes[-1])
    assert out_ppmi.shape == (N, layer_sizes[-1])
    # softmax rows sum to 1 (tolerance accounts for the approx EUP reciprocal)
    assert jnp.allclose(jnp.sum(out_a, axis=-1), 1.0, atol=5e-3)
    assert jnp.allclose(jnp.sum(out_ppmi, axis=-1), 1.0, atol=5e-3)
    # match the pure-JAX reference
    assert jnp.allclose(out_a, ref_a, atol=5e-3)
    assert jnp.allclose(out_ppmi, ref_p, atol=5e-3)

    # bf16-MXU variant (operands pre-cast in the wrapper, f32 accumulation);
    # looser tolerance for the bf16-rounded diffusion matrices.
    out_a16, out_p16 = dgcn_forward(x, adjacency, ppmi, weights,
                                    use_bf16_matmul=True)
    jax.block_until_ready((out_a16, out_p16))
    assert out_a16.shape == (N, layer_sizes[-1])
    assert jnp.allclose(out_a16, ref_a, atol=5e-2)
    assert jnp.allclose(out_p16, ref_p, atol=5e-2)

    print("KERNEL_OK")
</pallas_src>

<mosaic_0001>
module attributes {stable_mosaic.version = 11 : i64} {
  func.func @_dgcn_fused_kernel(%arg0: memref<32x16xf32, #tpu.memory_space<vmem>>, %arg1: memref<16x32xf32, #tpu.memory_space<vmem>>, %arg2: memref<32x16xf32, #tpu.memory_space<vmem>>, %arg3: memref<16x128xf32, #tpu.memory_space<vmem>>, %arg4: memref<16x128xf32, #tpu.memory_space<vmem>>, %arg5: memref<16x128xf32, #tpu.memory_space<vmem>>) attributes {dimension_semantics = [], scalar_prefetch = 0 : i64, scratch_operands = 0 : i64, tpu.core_type = #tpu.core_type<tc>} {
    %c0 = arith.constant 0 : index
    %c0_0 = arith.constant 0 : index
    %0 = vector.load %arg2[%c0, %c0_0] : memref<32x16xf32, #tpu.memory_space<vmem>>, vector<32x16xf32>
    %c0_1 = arith.constant 0 : index
    %c0_2 = arith.constant 0 : index
    %1 = vector.load %arg1[%c0_1, %c0_2] : memref<16x32xf32, #tpu.memory_space<vmem>>, vector<16x32xf32>
    %cst = arith.constant dense<0.000000e+00> : vector<16x16xf32>
    %2 = tpu.matmul %1, %0, %cst {dimension_numbers = #tpu.dot_dimension_numbers<[1], [0], [0], [1], [0, 0, 1, 1], [], []>} : vector<16x32xf32>, vector<32x16xf32>, vector<16x16xf32> -> vector<16x16xf32>
    %c0_3 = arith.constant 0 : index
    %c0_4 = arith.constant 0 : index
    %3 = vector.load %arg0[%c0_3, %c0_4] : memref<32x16xf32, #tpu.memory_space<vmem>>, vector<32x16xf32>
    %cst_5 = arith.constant dense<0.000000e+00> : vector<32x16xf32>
    %4 = tpu.matmul %3, %2, %cst_5 {dimension_numbers = #tpu.dot_dimension_numbers<[1], [0], [0], [1], [0, 0, 1, 1], [], []>} : vector<32x16xf32>, vector<16x16xf32>, vector<32x16xf32> -> vector<32x16xf32>
    %5 = vector.extract_strided_slice %4 {offsets = [0, 0], sizes = [16, 16], strides = [1, 1]} : vector<32x16xf32> to vector<16x16xf32>
    %6 = vector.extract_strided_slice %4 {offsets = [16, 0], sizes = [16, 16], strides = [1, 1]} : vector<32x16xf32> to vector<16x16xf32>
    %cst_6 = arith.constant 0.000000e+00 : f32
    %7 = vector.broadcast %cst_6 : f32 to vector<16x16xf32>
    %8 = arith.maximumf %5, %7 : vector<16x16xf32>
    %cst_7 = arith.constant 0.000000e+00 : f32
    %9 = vector.broadcast %cst_7 : f32 to vector<16x16xf32>
    %10 = arith.maximumf %6, %9 : vector<16x16xf32>
    %c0_8 = arith.constant 0 : index
    %c0_9 = arith.constant 0 : index
    %11 = vector.load %arg0[%c0_8, %c0_9] : memref<32x16xf32, #tpu.memory_space<vmem>>, vector<16x16xf32>
    %c16 = arith.constant 16 : index
    %c0_10 = arith.constant 0 : index
    %12 = vector.load %arg0[%c16, %c0_10] : memref<32x16xf32, #tpu.memory_space<vmem>>, vector<16x16xf32>
    %c0_11 = arith.constant 0 : index
    %c0_12 = arith.constant 0 : index
    %13 = vector.load %arg3[%c0_11, %c0_12] : memref<16x128xf32, #tpu.memory_space<vmem>>, vector<16x128xf32>
    %cst_13 = arith.constant dense<0.000000e+00> : vector<16x16xf32>
    %14 = tpu.matmul %11, %8, %cst_13 {dimension_numbers = #tpu.dot_dimension_numbers<[1], [0], [0], [1], [0, 0, 1, 1], [], []>} : vector<16x16xf32>, vector<16x16xf32>, vector<16x16xf32> -> vector<16x16xf32>
    %cst_14 = arith.constant dense<0.000000e+00> : vector<16x128xf32>
    %15 = tpu.matmul %14, %13, %cst_14 {dimension_numbers = #tpu.dot_dimension_numbers<[1], [0], [0], [1], [0, 0, 1, 1], [], []>} : vector<16x16xf32>, vector<16x128xf32>, vector<16x128xf32> -> vector<16x128xf32>
    %cst_15 = arith.constant dense<0.000000e+00> : vector<16x16xf32>
    %16 = tpu.matmul %12, %10, %cst_15 {dimension_numbers = #tpu.dot_dimension_numbers<[1], [0], [0], [1], [0, 0, 1, 1], [], []>} : vector<16x16xf32>, vector<16x16xf32>, vector<16x16xf32> -> vector<16x16xf32>
    %cst_16 = arith.constant dense<0.000000e+00> : vector<16x128xf32>
    %17 = tpu.matmul %16, %13, %cst_16 {dimension_numbers = #tpu.dot_dimension_numbers<[1], [0], [0], [1], [0, 0, 1, 1], [], []>} : vector<16x16xf32>, vector<16x128xf32>, vector<16x128xf32> -> vector<16x128xf32>
    %cst_17 = arith.constant 1.00000501 : f32
    %18 = vector.broadcast %cst_17 : f32 to vector<16x128xf32>
    %19 = arith.mulf %17, %18 : vector<16x128xf32>
    %20 = tpu.iota {dimensions = array<i32: 1>} : vector<16x128xi32>
    %c4_i32 = arith.constant 4 : i32
    %21 = vector.broadcast %c4_i32 : i32 to vector<16x128xi32>
    %22 = arith.cmpi slt, %20, %21 : vector<16x128xi32>
    %cst_18 = arith.constant -1.000000e+30 : f32
    %23 = vector.broadcast %cst_18 : f32 to vector<16x128xf32>
    %24 = arith.select %22, %15, %23 : vector<16x128xi1>, vector<16x128xf32>
    %c4_i32_19 = arith.constant 4 : i32
    %25 = vector.broadcast %c4_i32_19 : i32 to vector<16x128xi32>
    %26 = arith.cmpi slt, %20, %25 : vector<16x128xi32>
    %cst_20 = arith.constant -1.000000e+30 : f32
    %27 = vector.broadcast %cst_20 : f32 to vector<16x128xf32>
    %28 = arith.select %26, %19, %27 : vector<16x128xi1>, vector<16x128xf32>
    %cst_21 = arith.constant dense<0xFF800000> : vector<16xf32>
    %29 = vector.multi_reduction <maximumf>, %24, %cst_21 [1] : vector<16x128xf32> to vector<16xf32>
    %30 = vector.shape_cast %29 : vector<16xf32> to vector<16x1xf32>
    %31 = vector.broadcast %30 : vector<16x1xf32> to vector<16x128xf32>
    %32 = arith.subf %24, %31 : vector<16x128xf32>
    %33 = math.exp %32 : vector<16x128xf32>
    %cst_22 = arith.constant dense<0.000000e+00> : vector<16xf32>
    %34 = vector.multi_reduction <add>, %33, %cst_22 [1] : vector<16x128xf32> to vector<16xf32>
    %35 = vector.shape_cast %34 : vector<16xf32> to vector<16x1xf32>
    %36 = tpu.reciprocal %35 {approx = true} : vector<16x1xf32> -> vector<16x1xf32>
    %37 = vector.broadcast %36 : vector<16x1xf32> to vector<16x128xf32>
    %38 = arith.mulf %33, %37 : vector<16x128xf32>
    %c0_23 = arith.constant 0 : index
    %c0_24 = arith.constant 0 : index
    %39 = vector.load %arg4[%c0_23, %c0_24] : memref<16x128xf32, #tpu.memory_space<vmem>>, vector<16x128xf32>
    tpu.vector_store %arg4[%c0_23, %c0_24], %38 {strides = array<i32>} : memref<16x128xf32, #tpu.memory_space<vmem>>, vector<16x128xf32>,
    %cst_25 = arith.constant dense<0xFF800000> : vector<16xf32>
    %40 = vector.multi_reduction <maximumf>, %28, %cst_25 [1] : vector<16x128xf32> to vector<16xf32>
    %41 = vector.shape_cast %40 : vector<16xf32> to vector<16x1xf32>
    %42 = vector.broadcast %41 : vector<16x1xf32> to vector<16x128xf32>
    %43 = arith.subf %28, %42 : vector<16x128xf32>
    %44 = math.exp %43 : vector<16x128xf32>
    %cst_26 = arith.constant dense<0.000000e+00> : vector<16xf32>
    %45 = vector.multi_reduction <add>, %44, %cst_26 [1] : vector<16x128xf32> to vector<16xf32>
    %46 = vector.shape_cast %45 : vector<16xf32> to vector<16x1xf32>
    %47 = tpu.reciprocal %46 {approx = true} : vector<16x1xf32> -> vector<16x1xf32>
    %48 = vector.broadcast %47 : vector<16x1xf32> to vector<16x128xf32>
    %49 = arith.mulf %44, %48 : vector<16x128xf32>
    %c0_27 = arith.constant 0 : index
    %c0_28 = arith.constant 0 : index
    %50 = vector.load %arg5[%c0_27, %c0_28] : memref<16x128xf32, #tpu.memory_space<vmem>>, vector<16x128xf32>
    tpu.vector_store %arg5[%c0_27, %c0_28], %49 {strides = array<i32>} : memref<16x128xf32, #tpu.memory_space<vmem>>, vector<16x128xf32>,
    return
  }
}

</mosaic_0001>

<llo_original>
// kernel: tpu_custom_call.1
$region0: #{tpu_custom_call.1}
  #allocation0 [shape = 'u32[]', space=smem, size = 0x4, offset = 0x4, fixed_abs, tag = 'smem constant byte address 0x4 - core index']
  #allocation1 [shape = 'u32[144,128]{1,0:T(1,128)}', space=vmem, size = 0x12000, scoped, tag = 'internal scratch']
  %s0 = inlined_call_operand.vmem [shape: f32[32,16], index: 0, kind: input, shape index: {}]
  %s1 = inlined_call_operand.vmem [shape: f32[16,32], index: 1, kind: input, shape index: {}]
  %s2 = inlined_call_operand.vmem [shape: f32[32,16], index: 2, kind: input, shape index: {}]
  %s3 = inlined_call_operand.vmem [shape: f32[16,128], index: 3, kind: input, shape index: {}]
  %s4 = inlined_call_operand.hbm [shape: f32[16,128], index: 4, kind: output, shape index: {0}]
  %s5 = inlined_call_operand.hbm [shape: f32[16,128], index: 5, kind: output, shape index: {1}]
  %6 = xla_tuple %s4, %s5
  %s7 = sld [smem:[#allocation0]]
  $region34: #{tpu_custom_call.1} parent=0
    _
  %s9 = ssub.s32 1, %s7
  %s10 = scalar_select 0, %s9, %s7
  $region1: #{tpu_custom_call.1} parent=0
    #allocation2 [shape = 'u8[8192]{0}', space=vmem, size = 0x2000, scoped, tag = 'output window, operand 0, single buffered']
    #allocation3 [shape = 's32[1]{0}', space=sflag, size = 0x4, scoped, tag = 'scoped memory for tpu_custom_call.1']
    #allocation4 [shape = 'u8[8192]{0}', space=vmem, size = 0x2000, scoped, tag = 'output window, operand 1, single buffered']
    #allocation5 [shape = 's32[1]{0}', space=sflag, size = 0x4, scoped, tag = 'scoped memory for tpu_custom_call.1']
    %11 = vsyncpa [#allocation3], 0
    %12 = vsyncpa [#allocation5], 0
    // Predicated region
    $region2: #{tpu_custom_call.1} parent=1 // pred_check
      _
    $region3: #{tpu_custom_call.1} parent=1 // pred_check_branch
      %14 = sbr.rel (0) target = $region5
    $region4: #{tpu_custom_call.1} parent=1 // pred_region
      _
    $region5: #{tpu_custom_call.1} parent=1 // pred_fallthru
      _
    // Predicated region
    $region6: #{tpu_custom_call.1} parent=1 // pred_check
      _
    $region7: #{tpu_custom_call.1} parent=1 // pred_check_branch
      %16 = sbr.rel (0) target = $region9
    $region8: #{tpu_custom_call.1} parent=1 // pred_region
      _
    $region9: #{tpu_custom_call.1} parent=1 // pred_fallthru
      _
    // Predicated region
    $region10: #{tpu_custom_call.1} parent=1 // pred_check
      _
    $region11: #{tpu_custom_call.1} parent=1 // pred_check_branch
      %18 = sbr.rel (0) target = $region13
    $region12: #{tpu_custom_call.1} parent=1 // pred_region
      _
    $region13: #{tpu_custom_call.1} parent=1 // pred_fallthru
      _
    // Predicated region
    $region14: #{tpu_custom_call.1} parent=1 // pred_check
      _
    $region15: #{tpu_custom_call.1} parent=1 // pred_check_branch
      %20 = sbr.rel (0) target = $region17
    $region16: #{tpu_custom_call.1} parent=1 // pred_region
      _
    $region17: #{tpu_custom_call.1} parent=1 // pred_fallthru
      _
    %v21 = vld [vmem:[%s2] sm:$0xff]
    %v22 = vld [vmem:[%s2 + $0x8] sm:$0xff]
    %v23 = vld [vmem:[%s2 + $0x10] sm:$0xff]
    %v24 = vld [vmem:[%s2 + $0x18] sm:$0xff]
    %v25 = vld [vmem:[%s1] sm:$0xff]
    %v26 = vld [vmem:[%s1 + $0x8] sm:$0xff]
    %vm27 = vcmask 261120
    %v29 = vsel %vm27, %v25, 0
    %v32 = vsel %vm27, %v26, 0
    %34 = vmatprep.subr.mxu0 0.0
    %35 = vmatpush1.msra.mxu0 %v21
    %36 = vmatprep.subr.mxu0 0.0
    %37 = vmatpush1.msra.mxu0 %v22
    %38 = vmatprep.subr.mxu0 0.0
    %39 = vmatpush1.msra.mxu0 %v23
    %40 = vmatprep.subr.mxu0 0.0
    %41 = vmatpush1.msra.mxu0 %v24
    %42 = vmatprep.subr.mxu0 0.0
    %43 = vmatpush1.msra.mxu0 0.0
    %44 = vmatprep.subr.mxu0 0.0
    %45 = vmatpush1.msra.mxu0 0.0
    %46 = vmatprep.subr.mxu0 0.0
    %47 = vmatpush1.msra.mxu0 0.0
    %48 = vmatprep.subr.mxu0 0.0
    %49 = vmatpush1.msra.mxu0 0.0
    %50 = vmatprep.subr.mxu0 0.0
    %51 = vmatpush1.msra.mxu0 0.0
    %52 = vmatprep.subr.mxu0 0.0
    %53 = vmatpush1.msra.mxu0 0.0
    %54 = vmatprep.subr.mxu0 0.0
    %55 = vmatpush1.msra.mxu0 0.0
    %56 = vmatprep.subr.mxu0 0.0
    %57 = vmatpush1.msra.mxu0 0.0
    %58 = vmatprep.subr.mxu0 0.0
    %59 = vmatpush1.msra.mxu0 0.0
    %60 = vmatprep.subr.mxu0 0.0
    %61 = vmatpush1.msra.mxu0 0.0
    %62 = vmatprep.subr.mxu0 0.0
    %63 = vmatpush1.msra.mxu0 0.0
    %64 = vmatprep.subr.mxu0 0.0
    %65 = vmatpush1.msra.mxu0 0.0
    %66 = vmatprep.subr.mxu0 0.0
    %67 = vmatpush1.msra.mxu0 0.0
    %68 = vmatprep.subr.mxu0 0.0
    %69 = vmatpush1.msra.mxu0 0.0
    %70 = vmatprep.subr.mxu0 0.0
    %71 = vmatpush1.msra.mxu0 0.0
    %72 = vmatprep.subr.mxu0 0.0
    %73 = vmatpush1.msra.mxu0 0.0
    %74 = vmatprep.subr.mxu0 0.0
    %75 = vmatpush1.msra.mxu0 0.0
    %76 = vmatprep.subr.mxu0 0.0
    %77 = vmatpush1.msra.mxu0 0.0
    %78 = vmatprep.subr.mxu0 0.0
    %79 = vmatpush1.msra.mxu0 0.0
    %80 = vmatprep.subr.mxu0 0.0
    %81 = vmatpush1.msra.mxu0 0.0
    %82 = vmatprep.subr.mxu0 0.0
    %83 = vmatpush1.msra.mxu0 0.0
    %84 = vmatprep.subr.mxu0 0.0
    %85 = vmatpush1.msra.mxu0 0.0
    %86 = vmatprep.subr.mxu0 0.0
    %87 = vmatpush1.msra.mxu0 0.0
    %88 = vmatprep.subr.mxu0 0.0
    %89 = vmatpush1.msra.mxu0 0.0
    %90 = vmatprep.subr.mxu0 0.0
    %91 = vmatpush1.msra.mxu0 0.0
    %92 = vmatprep.subr.mxu0 0.0
    %93 = vmatpush1.msra.mxu0 0.0
    %94 = vmatprep.subr.mxu0 0.0
    %95 = vmatpush1.msra.mxu0 0.0
    %96 = vmatprep.subr.mxu0 0.0
    %97 = vmatpush1.msra.mxu0 0.0
    %98 = vmatprep.mubr.f32.mxu0 0.0
    %99 = vmatmul.mubr.f32.gmra.mrb[0].mxu0 %v29
    %v100 = vpop.f32.mrb[0].mxu0
    %v101 = vadd.f32 0.0, %v100
    %v102 = vpop.f32.mrb[0].mxu0
    %103 = vmatprep.mubr.f32.mxu0 0.0
    %104 = vmatmul.mubr.f32.gmra.mrb[0].mxu0 %v32
    %v105 = vpop.f32.mrb[0].mxu0
    %v106 = vadd.f32 0.0, %v105
    %v107 = vpop.f32.mrb[0].mxu0
    %108 = vdwg.mxu0
    %v109 = vld [vmem:[%s0] sm:$0xff]
    %v110 = vld [vmem:[%s0 + $0x8] sm:$0xff]
    %v111 = vld [vmem:[%s0 + $0x10] sm:$0xff]
    %v112 = vld [vmem:[%s0 + $0x18] sm:$0xff]
    %vm113 = vcmask 130048
    %v115 = vsel %vm113, %v109, 0
    %v118 = vsel %vm113, %v110, 0
    %v121 = vsel %vm113, %v111, 0
    %v124 = vsel %vm113, %v112, 0
    %126 = vmatprep.subr.mxu0 0.0
    %127 = vmatpush1.msra.mxu0 %v101
    %128 = vmatprep.subr.mxu0 0.0
    %129 = vmatpush1.msra.mxu0 %v106
    %130 = vmatprep.subr.mxu0 0.0
    %131 = vmatpush1.msra.mxu0 0.0
    %132 = vmatprep.subr.mxu0 0.0
    %133 = vmatpush1.msra.mxu0 0.0
    %134 = vmatprep.subr.mxu0 0.0
    %135 = vmatpush1.msra.mxu0 0.0
    %136 = vmatprep.subr.mxu0 0.0
    %137 = vmatpush1.msra.mxu0 0.0
    %138 = vmatprep.subr.mxu0 0.0
    %139 = vmatpush1.msra.mxu0 0.0
    %140 = vmatprep.subr.mxu0 0.0
    %141 = vmatpush1.msra.mxu0 0.0
    %142 = vmatprep.subr.mxu0 0.0
    %143 = vmatpush1.msra.mxu0 0.0
    %144 = vmatprep.subr.mxu0 0.0
    %145 = vmatpush1.msra.mxu0 0.0
    %146 = vmatprep.subr.mxu0 0.0
    %147 = vmatpush1.msra.mxu0 0.0
    %148 = vmatprep.subr.mxu0 0.0
    %149 = vmatpush1.msra.mxu0 0.0
    %150 = vmatprep.subr.mxu0 0.0
    %151 = vmatpush1.msra.mxu0 0.0
    %152 = vmatprep.subr.mxu0 0.0
    %153 = vmatpush1.msra.mxu0 0.0
    %154 = vmatprep.subr.mxu0 0.0
    %155 = vmatpush1.msra.mxu0 0.0
    %156 = vmatprep.subr.mxu0 0.0
    %157 = vmatpush1.msra.mxu0 0.0
    %158 = vmatprep.subr.mxu0 0.0
    %159 = vmatpush1.msra.mxu0 0.0
    %160 = vmatprep.subr.mxu0 0.0
    %161 = vmatpush1.msra.mxu0 0.0
    %162 = vmatprep.subr.mxu0 0.0
    %163 = vmatpush1.msra.mxu0 0.0
    %164 = vmatprep.subr.mxu0 0.0
    %165 = vmatpush1.msra.mxu0 0.0
    %166 = vmatprep.subr.mxu0 0.0
    %167 = vmatpush1.msra.mxu0 0.0
    %168 = vmatprep.subr.mxu0 0.0
    %169 = vmatpush1.msra.mxu0 0.0
    %170 = vmatprep.subr.mxu0 0.0
    %171 = vmatpush1.msra.mxu0 0.0
    %172 = vmatprep.subr.mxu0 0.0
    %173 = vmatpush1.msra.mxu0 0.0
    %174 = vmatprep.subr.mxu0 0.0
    %175 = vmatpush1.msra.mxu0 0.0
    %176 = vmatprep.subr.mxu0 0.0
    %177 = vmatpush1.msra.mxu0 0.0
    %178 = vmatprep.subr.mxu0 0.0
    %179 = vmatpush1.msra.mxu0 0.0
    %180 = vmatprep.subr.mxu0 0.0
    %181 = vmatpush1.msra.mxu0 0.0
    %182 = vmatprep.subr.mxu0 0.0
    %183 = vmatpush1.msra.mxu0 0.0
    %184 = vmatprep.subr.mxu0 0.0
    %185 = vmatpush1.msra.mxu0 0.0
    %186 = vmatprep.subr.mxu0 0.0
    %187 = vmatpush1.msra.mxu0 0.0
    %188 = vmatprep.subr.mxu0 0.0
    %189 = vmatpush1.msra.mxu0 0.0
    %190 = vmatprep.mubr.f32.mxu0 0.0
    %191 = vmatmul.mubr.f32.gmra.mrb[0].mxu0 %v115
    %v192 = vpop.f32.mrb[0].mxu0
    %v193 = vadd.f32 0.0, %v192
    %v194 = vpop.f32.mrb[0].mxu0
    %195 = vmatprep.mubr.f32.mxu0 0.0
    %196 = vmatmul.mubr.f32.gmra.mrb[0].mxu0 %v118
    %v197 = vpop.f32.mrb[0].mxu0
    %v198 = vadd.f32 0.0, %v197
    %v199 = vpop.f32.mrb[0].mxu0
    %200 = vmatprep.mubr.f32.mxu0 0.0
    %201 = vmatmul.mubr.f32.gmra.mrb[0].mxu0 %v121
    %v202 = vpop.f32.mrb[0].mxu0
    %v203 = vadd.f32 0.0, %v202
    %v204 = vpop.f32.mrb[0].mxu0
    %205 = vmatprep.mubr.f32.mxu0 0.0
    %206 = vmatmul.mubr.f32.gmra.mrb[0].mxu0 %v124
    %v207 = vpop.f32.mrb[0].mxu0
    %v208 = vadd.f32 0.0, %v207
    %v209 = vpop.f32.mrb[0].mxu0
    %210 = vdwg.mxu0
    %v211 = vmax.f32 %v193, 0.0
    %v212 = vmax.f32 %v198, 0.0
    %v213 = vmax.f32 %v203, 0.0
    %v214 = vmax.f32 %v208, 0.0
    %v215 = vld [vmem:[%s0] sm:$0xff]
    %v216 = vld [vmem:[%s0 + $0x8] sm:$0xff]
    %v217 = vld [vmem:[%s3] sm:$0xff]
    %v218 = vld [vmem:[%s3 + $0x8] sm:$0xff]
    %v220 = vsel %vm113, %v215, 0
    %v223 = vsel %vm113, %v216, 0
    %225 = vmatprep.subr.mxu0 0.0
    %226 = vmatpush1.msra.mxu0 %v211
    %227 = vmatprep.subr.mxu0 0.0
    %228 = vmatpush1.msra.mxu0 %v212
    %229 = vmatprep.subr.mxu0 0.0
    %230 = vmatpush1.msra.mxu0 0.0
    %231 = vmatprep.subr.mxu0 0.0
    %232 = vmatpush1.msra.mxu0 0.0
    %233 = vmatprep.subr.mxu0 0.0
    %234 = vmatpush1.msra.mxu0 0.0
    %235 = vmatprep.subr.mxu0 0.0
    %236 = vmatpush1.msra.mxu0 0.0
    %237 = vmatprep.subr.mxu0 0.0
    %238 = vmatpush1.msra.mxu0 0.0
    %239 = vmatprep.subr.mxu0 0.0
    %240 = vmatpush1.msra.mxu0 0.0
    %241 = vmatprep.subr.mxu0 0.0
    %242 = vmatpush1.msra.mxu0 0.0
    %243 = vmatprep.subr.mxu0 0.0
    %244 = vmatpush1.msra.mxu0 0.0
    %245 = vmatprep.subr.mxu0 0.0
    %246 = vmatpush1.msra.mxu0 0.0
    %247 = vmatprep.subr.mxu0 0.0
    %248 = vmatpush1.msra.mxu0 0.0
    %249 = vmatprep.subr.mxu0 0.0
    %250 = vmatpush1.msra.mxu0 0.0
    %251 = vmatprep.subr.mxu0 0.0
    %252 = vmatpush1.msra.mxu0 0.0
    %253 = vmatprep.subr.mxu0 0.0
    %254 = vmatpush1.msra.mxu0 0.0
    %255 = vmatprep.subr.mxu0 0.0
    %256 = vmatpush1.msra.mxu0 0.0
    %257 = vmatprep.subr.mxu0 0.0
    %258 = vmatpush1.msra.mxu0 0.0
    %259 = vmatprep.subr.mxu0 0.0
    %260 = vmatpush1.msra.mxu0 0.0
    %261 = vmatprep.subr.mxu0 0.0
    %262 = vmatpush1.msra.mxu0 0.0
    %263 = vmatprep.subr.mxu0 0.0
    %264 = vmatpush1.msra.mxu0 0.0
    %265 = vmatprep.subr.mxu0 0.0
    %266 = vmatpush1.msra.mxu0 0.0
    %267 = vmatprep.subr.mxu0 0.0
    %268 = vmatpush1.msra.mxu0 0.0
    %269 = vmatprep.subr.mxu0 0.0
    %270 = vmatpush1.msra.mxu0 0.0
    %271 = vmatprep.subr.mxu0 0.0
    %272 = vmatpush1.msra.mxu0 0.0
    %273 = vmatprep.subr.mxu0 0.0
    %274 = vmatpush1.msra.mxu0 0.0
    %275 = vmatprep.subr.mxu0 0.0
    %276 = vmatpush1.msra.mxu0 0.0
    %277 = vmatprep.subr.mxu0 0.0
    %278 = vmatpush1.msra.mxu0 0.0
    %279 = vmatprep.subr.mxu0 0.0
    %280 = vmatpush1.msra.mxu0 0.0
    %281 = vmatprep.subr.mxu0 0.0
    %282 = vmatpush1.msra.mxu0 0.0
    %283 = vmatprep.subr.mxu0 0.0
    %284 = vmatpush1.msra.mxu0 0.0
    %285 = vmatprep.subr.mxu0 0.0
    %286 = vmatpush1.msra.mxu0 0.0
    %287 = vmatprep.subr.mxu0 0.0
    %288 = vmatpush1.msra.mxu0 0.0
    %289 = vmatprep.mubr.f32.mxu0 0.0
    %290 = vmatmul.mubr.f32.gmra.mrb[0].mxu0 %v220
    %v291 = vpop.f32.mrb[0].mxu0
    %v292 = vadd.f32 0.0, %v291
    %v293 = vpop.f32.mrb[0].mxu0
    %294 = vmatprep.mubr.f32.mxu0 0.0
    %295 = vmatmul.mubr.f32.gmra.mrb[0].mxu0 %v223
    %v296 = vpop.f32.mrb[0].mxu0
    %v297 = vadd.f32 0.0, %v296
    %v298 = vpop.f32.mrb[0].mxu0
    %299 = vdwg.mxu0
    %v301 = vsel %vm113, %v292, 0
    %v304 = vsel %vm113, %v297, 0
    %306 = vmatprep.subr.mxu0 0.0
    %307 = vmatpush1.msra.mxu0 %v217
    %308 = vmatprep.subr.mxu0 0.0
    %309 = vmatpush1.msra.mxu0 %v218
    %310 = vmatprep.subr.mxu0 0.0
    %311 = vmatpush1.msra.mxu0 0.0
    %312 = vmatprep.subr.mxu0 0.0
    %313 = vmatpush1.msra.mxu0 0.0
    %314 = vmatprep.subr.mxu0 0.0
    %315 = vmatpush1.msra.mxu0 0.0
    %316 = vmatprep.subr.mxu0 0.0
    %317 = vmatpush1.msra.mxu0 0.0
    %318 = vmatprep.subr.mxu0 0.0
    %319 = vmatpush1.msra.mxu0 0.0
    %320 = vmatprep.subr.mxu0 0.0
    %321 = vmatpush1.msra.mxu0 0.0
    %322 = vmatprep.subr.mxu0 0.0
    %323 = vmatpush1.msra.mxu0 0.0
    %324 = vmatprep.subr.mxu0 0.0
    %325 = vmatpush1.msra.mxu0 0.0
    %326 = vmatprep.subr.mxu0 0.0
    %327 = vmatpush1.msra.mxu0 0.0
    %328 = vmatprep.subr.mxu0 0.0
    %329 = vmatpush1.msra.mxu0 0.0
    %330 = vmatprep.subr.mxu0 0.0
    %331 = vmatpush1.msra.mxu0 0.0
    %332 = vmatprep.subr.mxu0 0.0
    %333 = vmatpush1.msra.mxu0 0.0
    %334 = vmatprep.subr.mxu0 0.0
    %335 = vmatpush1.msra.mxu0 0.0
    %336 = vmatprep.subr.mxu0 0.0
    %337 = vmatpush1.msra.mxu0 0.0
    %338 = vmatprep.subr.mxu0 0.0
    %339 = vmatpush1.msra.mxu0 0.0
    %340 = vmatprep.subr.mxu0 0.0
    %341 = vmatpush1.msra.mxu0 0.0
    %342 = vmatprep.subr.mxu0 0.0
    %343 = vmatpush1.msra.mxu0 0.0
    %344 = vmatprep.subr.mxu0 0.0
    %345 = vmatpush1.msra.mxu0 0.0
    %346 = vmatprep.subr.mxu0 0.0
    %347 = vmatpush1.msra.mxu0 0.0
    %348 = vmatprep.subr.mxu0 0.0
    %349 = vmatpush1.msra.mxu0 0.0
    %350 = vmatprep.subr.mxu0 0.0
    %351 = vmatpush1.msra.mxu0 0.0
    %352 = vmatprep.subr.mxu0 0.0
    %353 = vmatpush1.msra.mxu0 0.0
    %354 = vmatprep.subr.mxu0 0.0
    %355 = vmatpush1.msra.mxu0 0.0
    %356 = vmatprep.subr.mxu0 0.0
    %357 = vmatpush1.msra.mxu0 0.0
    %358 = vmatprep.subr.mxu0 0.0
    %359 = vmatpush1.msra.mxu0 0.0
    %360 = vmatprep.subr.mxu0 0.0
    %361 = vmatpush1.msra.mxu0 0.0
    %362 = vmatprep.subr.mxu0 0.0
    %363 = vmatpush1.msra.mxu0 0.0
    %364 = vmatprep.subr.mxu0 0.0
    %365 = vmatpush1.msra.mxu0 0.0
    %366 = vmatprep.subr.mxu0 0.0
    %367 = vmatpush1.msra.mxu0 0.0
    %368 = vmatprep.subr.mxu0 0.0
    %369 = vmatpush1.msra.mxu0 0.0
    %370 = vmatprep.mubr.f32.mxu0 0.0
    %371 = vmatmul.mubr.f32.gmra.mrb[0].mxu0 %v301
    %v372 = vpop.f32.mrb[0].mxu0
    %v373 = vadd.f32 0.0, %v372
    %v374 = vpop.f32.mrb[0].mxu0
    %375 = vmatprep.mubr.f32.mxu0 0.0
    %376 = vmatmul.mubr.f32.gmra.mrb[0].mxu0 %v304
    %v377 = vpop.f32.mrb[0].mxu0
    %v378 = vadd.f32 0.0, %v377
    %v379 = vpop.f32.mrb[0].mxu0
    %380 = vdwg.mxu0
    %381 = vmatprep.subr.mxu0 0.0
    %382 = vmatpush1.msra.mxu0 %v213
    %383 = vmatprep.subr.mxu0 0.0
    %384 = vmatpush1.msra.mxu0 %v214
    %385 = vmatprep.subr.mxu0 0.0
    %386 = vmatpush1.msra.mxu0 0.0
    %387 = vmatprep.subr.mxu0 0.0
    %388 = vmatpush1.msra.mxu0 0.0
    %389 = vmatprep.subr.mxu0 0.0
    %390 = vmatpush1.msra.mxu0 0.0
    %391 = vmatprep.subr.mxu0 0.0
    %392 = vmatpush1.msra.mxu0 0.0
    %393 = vmatprep.subr.mxu0 0.0
    %394 = vmatpush1.msra.mxu0 0.0
    %395 = vmatprep.subr.mxu0 0.0
    %396 = vmatpush1.msra.mxu0 0.0
    %397 = vmatprep.subr.mxu0 0.0
    %398 = vmatpush1.msra.mxu0 0.0
    %399 = vmatprep.subr.mxu0 0.0
    %400 = vmatpush1.msra.mxu0 0.0
    %401 = vmatprep.subr.mxu0 0.0
    %402 = vmatpush1.msra.mxu0 0.0
    %403 = vmatprep.subr.mxu0 0.0
    %404 = vmatpush1.msra.mxu0 0.0
    %405 = vmatprep.subr.mxu0 0.0
    %406 = vmatpush1.msra.mxu0 0.0
    %407 = vmatprep.subr.mxu0 0.0
    %408 = vmatpush1.msra.mxu0 0.0
    %409 = vmatprep.subr.mxu0 0.0
    %410 = vmatpush1.msra.mxu0 0.0
    %411 = vmatprep.subr.mxu0 0.0
    %412 = vmatpush1.msra.mxu0 0.0
    %413 = vmatprep.subr.mxu0 0.0
    %414 = vmatpush1.msra.mxu0 0.0
    %415 = vmatprep.subr.mxu0 0.0
    %416 = vmatpush1.msra.mxu0 0.0
    %417 = vmatprep.subr.mxu0 0.0
    %418 = vmatpush1.msra.mxu0 0.0
    %419 = vmatprep.subr.mxu0 0.0
    %420 = vmatpush1.msra.mxu0 0.0
    %421 = vmatprep.subr.mxu0 0.0
    %422 = vmatpush1.msra.mxu0 0.0
    %423 = vmatprep.subr.mxu0 0.0
    %424 = vmatpush1.msra.mxu0 0.0
    %425 = vmatprep.subr.mxu0 0.0
    %426 = vmatpush1.msra.mxu0 0.0
    %427 = vmatprep.subr.mxu0 0.0
    %428 = vmatpush1.msra.mxu0 0.0
    %429 = vmatprep.subr.mxu0 0.0
    %430 = vmatpush1.msra.mxu0 0.0
    %431 = vmatprep.subr.mxu0 0.0
    %432 = vmatpush1.msra.mxu0 0.0
    %433 = vmatprep.subr.mxu0 0.0
    %434 = vmatpush1.msra.mxu0 0.0
    %435 = vmatprep.subr.mxu0 0.0
    %436 = vmatpush1.msra.mxu0 0.0
    %437 = vmatprep.subr.mxu0 0.0
    %438 = vmatpush1.msra.mxu0 0.0
    %439 = vmatprep.subr.mxu0 0.0
    %440 = vmatpush1.msra.mxu0 0.0
    %441 = vmatprep.subr.mxu0 0.0
    %442 = vmatpush1.msra.mxu0 0.0
    %443 = vmatprep.subr.mxu0 0.0
    %444 = vmatpush1.msra.mxu0 0.0
    %445 = vmatprep.mubr.f32.mxu0 0.0
    %446 = vmatmul.mubr.f32.gmra.mrb[0].mxu0 %v121
    %v447 = vpop.f32.mrb[0].mxu0
    %v448 = vadd.f32 0.0, %v447
    %v449 = vpop.f32.mrb[0].mxu0
    %450 = vmatprep.mubr.f32.mxu0 0.0
    %451 = vmatmul.mubr.f32.gmra.mrb[0].mxu0 %v124
    %v452 = vpop.f32.mrb[0].mxu0
    %v453 = vadd.f32 0.0, %v452
    %v454 = vpop.f32.mrb[0].mxu0
    %455 = vdwg.mxu0
    %v457 = vsel %vm113, %v448, 0
    %v460 = vsel %vm113, %v453, 0
    %462 = vmatprep.subr.mxu0 0.0
    %463 = vmatpush1.msra.mxu0 %v217
    %464 = vmatprep.subr.mxu0 0.0
    %465 = vmatpush1.msra.mxu0 %v218
    %466 = vmatprep.subr.mxu0 0.0
    %467 = vmatpush1.msra.mxu0 0.0
    %468 = vmatprep.subr.mxu0 0.0
    %469 = vmatpush1.msra.mxu0 0.0
    %470 = vmatprep.subr.mxu0 0.0
    %471 = vmatpush1.msra.mxu0 0.0
    %472 = vmatprep.subr.mxu0 0.0
    %473 = vmatpush1.msra.mxu0 0.0
    %474 = vmatprep.subr.mxu0 0.0
    %475 = vmatpush1.msra.mxu0 0.0
    %476 = vmatprep.subr.mxu0 0.0
    %477 = vmatpush1.msra.mxu0 0.0
    %478 = vmatprep.subr.mxu0 0.0
    %479 = vmatpush1.msra.mxu0 0.0
    %480 = vmatprep.subr.mxu0 0.0
    %481 = vmatpush1.msra.mxu0 0.0
    %482 = vmatprep.subr.mxu0 0.0
    %483 = vmatpush1.msra.mxu0 0.0
    %484 = vmatprep.subr.mxu0 0.0
    %485 = vmatpush1.msra.mxu0 0.0
    %486 = vmatprep.subr.mxu0 0.0
    %487 = vmatpush1.msra.mxu0 0.0
    %488 = vmatprep.subr.mxu0 0.0
    %489 = vmatpush1.msra.mxu0 0.0
    %490 = vmatprep.subr.mxu0 0.0
    %491 = vmatpush1.msra.mxu0 0.0
    %492 = vmatprep.subr.mxu0 0.0
    %493 = vmatpush1.msra.mxu0 0.0
    %494 = vmatprep.subr.mxu0 0.0
    %495 = vmatpush1.msra.mxu0 0.0
    %496 = vmatprep.subr.mxu0 0.0
    %497 = vmatpush1.msra.mxu0 0.0
    %498 = vmatprep.subr.mxu0 0.0
    %499 = vmatpush1.msra.mxu0 0.0
    %500 = vmatprep.subr.mxu0 0.0
    %501 = vmatpush1.msra.mxu0 0.0
    %502 = vmatprep.subr.mxu0 0.0
    %503 = vmatpush1.msra.mxu0 0.0
    %504 = vmatprep.subr.mxu0 0.0
    %505 = vmatpush1.msra.mxu0 0.0
    %506 = vmatprep.subr.mxu0 0.0
    %507 = vmatpush1.msra.mxu0 0.0
    %508 = vmatprep.subr.mxu0 0.0
    %509 = vmatpush1.msra.mxu0 0.0
    %510 = vmatprep.subr.mxu0 0.0
    %511 = vmatpush1.msra.mxu0 0.0
    %512 = vmatprep.subr.mxu0 0.0
    %513 = vmatpush1.msra.mxu0 0.0
    %514 = vmatprep.subr.mxu0 0.0
    %515 = vmatpush1.msra.mxu0 0.0
    %516 = vmatprep.subr.mxu0 0.0
    %517 = vmatpush1.msra.mxu0 0.0
    %518 = vmatprep.subr.mxu0 0.0
    %519 = vmatpush1.msra.mxu0 0.0
    %520 = vmatprep.subr.mxu0 0.0
    %521 = vmatpush1.msra.mxu0 0.0
    %522 = vmatprep.subr.mxu0 0.0
    %523 = vmatpush1.msra.mxu0 0.0
    %524 = vmatprep.subr.mxu0 0.0
    %525 = vmatpush1.msra.mxu0 0.0
    %526 = vmatprep.mubr.f32.mxu0 0.0
    %527 = vmatmul.mubr.f32.gmra.mrb[0].mxu0 %v457
    %v528 = vpop.f32.mrb[0].mxu0
    %v529 = vadd.f32 0.0, %v528
    %v530 = vpop.f32.mrb[0].mxu0
    %531 = vmatprep.mubr.f32.mxu0 0.0
    %532 = vmatmul.mubr.f32.gmra.mrb[0].mxu0 %v460
    %v533 = vpop.f32.mrb[0].mxu0
    %v534 = vadd.f32 0.0, %v533
    %v535 = vpop.f32.mrb[0].mxu0
    %536 = vdwg.mxu0
    %v537 = vmul.f32 %v529, 1.000005
    %v538 = vmul.f32 %v534, 1.000005
    %v539 = vlaneseq
    %v540 = vand.u32 %v539, 127
    %vm541 = vcmp.lt.s32.totalorder %v540, 4
    %v542 = vsel %vm541, %v373, -1e+30
    %v543 = vsel %vm541, %v378, -1e+30
    %v544 = vsel %vm541, %v537, -1e+30
    %v545 = vsel %vm541, %v538, -1e+30
    %546 = vmax.xlane.f32.xlu0 %v542
    %v547 = vpop.xlane.xlu0 %546
    %548 = vmax.xlane.f32.xlu0 %v543
    %v549 = vpop.xlane.xlu0 %548
    %v550 = vsub.f32 %v542, %v547
    %v551 = vsub.f32 %v543, %v549
    %v552 = vmul.f32 %v550, 1.442695
    %v553 = vpow.pop %v552
    %v554 = vmul.f32 %v551, 1.442695
    %v555 = vpow.pop %v554
    %556 = vadd.xlane.f32.xlu0 %v553
    %v557 = vpop.xlane.xlu0 %556
    %558 = vadd.xlane.f32.xlu0 %v555
    %v559 = vpop.xlane.xlu0 %558
    %v560 = vrcp.pop %v557
    %v561 = vrcp.pop %v559
    %v562 = vmul.f32 %v553, %v560
    %v563 = vmul.f32 %v555, %v561
    %564 = vst [vmem:[#allocation2] sm:$0xff] %v562
    %565 = vst [vmem:[#allocation2 + $0x8] sm:$0xff] %v563
    %566 = vmax.xlane.f32.xlu0 %v544
    %v567 = vpop.xlane.xlu0 %566
    %568 = vmax.xlane.f32.xlu0 %v545
    %v569 = vpop.xlane.xlu0 %568
    %v570 = vsub.f32 %v544, %v567
    %v571 = vsub.f32 %v545, %v569
    %v572 = vmul.f32 %v570, 1.442695
    %v573 = vpow.pop %v572
    %v574 = vmul.f32 %v571, 1.442695
    %v575 = vpow.pop %v574
    %576 = vadd.xlane.f32.xlu0 %v573
    %v577 = vpop.xlane.xlu0 %576
    %578 = vadd.xlane.f32.xlu0 %v575
    %v579 = vpop.xlane.xlu0 %578
    %v580 = vrcp.pop %v577
    %v581 = vrcp.pop %v579
    %v582 = vmul.f32 %v573, %v580
    %v583 = vmul.f32 %v575, %v581
    %584 = vst [vmem:[#allocation4] sm:$0xff] %v582
    %585 = vst [vmem:[#allocation4 + $0x8] sm:$0xff] %v583
    // Predicated region
    $region18: #{tpu_custom_call.1} parent=1 // pred_check
      _
    $region19: #{tpu_custom_call.1} parent=1 // pred_check_branch
      %587 = sbr.rel (0) target = $region21
    $region20: #{tpu_custom_call.1} parent=1 // pred_region
      %s589 = ssub.s32 256, 256
      %590 = vsyncadd [#allocation3], %s589
      %s591 = sshll.u32 [#allocation2], 4
      %s592 = int_to_ptr.vmem [resolvable:$true] %s591
      %597 = dma.vmem_to_hbm [thread:$0]  %s592, 256, %s4, [#allocation3], 128, 128, 8
    $region21: #{tpu_custom_call.1} parent=1 // pred_fallthru
      _
    // Predicated region
    $region22: #{tpu_custom_call.1} parent=1 // pred_check
      _
    $region23: #{tpu_custom_call.1} parent=1 // pred_check_branch
      %599 = sbr.rel (0) target = $region25
    $region24: #{tpu_custom_call.1} parent=1 // pred_region
      %s601 = ssub.s32 256, 256
      %602 = vsyncadd [#allocation5], %s601
      %s603 = sshll.u32 [#allocation4], 4
      %s604 = int_to_ptr.vmem [resolvable:$true] %s603
      %609 = dma.vmem_to_hbm [thread:$0]  %s604, 256, %s5, [#allocation5], 128, 128, 8
    $region25: #{tpu_custom_call.1} parent=1 // pred_fallthru
      _
    // Predicated region
    $region26: #{tpu_custom_call.1} parent=1 // pred_check
      _
    $region27: #{tpu_custom_call.1} parent=1 // pred_check_branch
      %611 = sbr.rel (0) target = $region29
    $region28: #{tpu_custom_call.1} parent=1 // pred_region
      %612 = dma.done [#allocation3], 256
    $region29: #{tpu_custom_call.1} parent=1 // pred_fallthru
      _
    // Predicated region
    $region30: #{tpu_custom_call.1} parent=1 // pred_check
      _
    $region31: #{tpu_custom_call.1} parent=1 // pred_check_branch
      %614 = sbr.rel (0) target = $region33
    $region32: #{tpu_custom_call.1} parent=1 // pred_region
      %615 = dma.done [#allocation5], 256
    $region33: #{tpu_custom_call.1} parent=1 // pred_fallthru
      _
    %616 = vsyncpa [#allocation3], 1
    %617 = vsyncpa [#allocation5], 1

</llo_original>
